<compile_context>
chip_gen: v7x
topology: tpu7x:2x2x1
jax: 0.10.0
libtpu: 0.0.40
codegen_flags: <defaults>
</compile_context>

<pallas_src>
import functools

import jax
import jax.numpy as jnp
from jax.experimental import pallas as pl
from jax.experimental.pallas import tpu as pltpu


def _pick_row_group(h, w, s):
    """How many H-rows to fold per slab row.

    Prefer the smallest divisor g of h with g*w a multiple of 128 (fully
    lane-dense minor dims) and a small scatter matrix; otherwise the smallest
    divisor with g*w >= 128; otherwise h (tiny slabs).
    """
    s_cap = 4 << 20                                   # cap on bf16 scatter matrix
    fallback = None
    for d in range(1, h + 1):
        if h % d:
            continue
        s_bytes = (d * w) * (d * w * s * s) * 2       # S is bf16
        if (d * w) % 128 == 0 and s_bytes <= s_cap:
            return d
        if fallback is None and d * w >= 128:
            fallback = d
    return fallback if fallback is not None else h


def _unpool_kernel(x_ref, s_ref, o_ref, *, split_f32):
    # x_ref: (m_blk, g*W); s_ref: (g*W, g*W*s^2) one-hot; o_ref: (m_blk, g*W*s^2)
    x = x_ref[...]
    scat = s_ref[...]
    if split_f32:
        # Exact 3-way bf16 split of f32 (non-overlapping mantissa segments),
        # so the one-hot matmul reproduces x bit-exactly and exact zeros.
        xf = x.astype(jnp.float32)
        x1 = xf.astype(jnp.bfloat16)
        r1 = xf - x1.astype(jnp.float32)
        x2 = r1.astype(jnp.bfloat16)
        x3 = (r1 - x2.astype(jnp.float32)).astype(jnp.bfloat16)
        acc = jnp.dot(x1, scat, preferred_element_type=jnp.float32)
        acc = acc + jnp.dot(x2, scat, preferred_element_type=jnp.float32)
        acc = acc + jnp.dot(x3, scat, preferred_element_type=jnp.float32)
    else:
        acc = jnp.dot(x, scat, preferred_element_type=jnp.float32)
    o_ref[...] = acc.astype(o_ref.dtype)


def unpool(x, stride=2):
    """Zero-stuffing upsample: (N, C, H, W) -> (N, C, H*stride, W*stride)."""
    assert x.ndim == 4
    n, c, h, w = x.shape
    s = int(stride)
    if s == 1:                                        # identity for stride 1
        return x

    itemsize = jnp.dtype(x.dtype).itemsize
    split_f32 = x.dtype != jnp.bfloat16

    g = _pick_row_group(h, w, s)
    rows = (n * c * h) // g
    k_in = g * w
    k_out = g * w * s * s

    # Constant one-hot scatter matrix: S[r*w + j, r*w*s*s + j*s] = 1.
    src = jnp.arange(k_in, dtype=jnp.int32)
    dst = (src // w) * (w * s * s) + (src % w) * s
    scat = (dst[:, None] == jnp.arange(k_out, dtype=jnp.int32)[None, :]
            ).astype(jnp.bfloat16)

    # ---- row-block sizing ---------------------------------------------------
    subl = {4: 8, 2: 16, 1: 32}.get(itemsize, 8)      # sublane tile per dtype
    bytes_per_row = (k_in + k_out) * itemsize
    if rows <= subl:
        m_blk = rows                                  # block == full dim
    else:
        target_step_bytes = 6 << 20                   # ~6 MiB of in+out per step
        m_blk = max(subl, (target_step_bytes // bytes_per_row) // subl * subl)
        # Keep >= 2 grid steps so the "parallel" axis shards over v7x's 2 TCs.
        cap = max(subl, (pl.cdiv(rows, 2) // subl) * subl)
        m_blk = min(m_blk, cap)
    grid = pl.cdiv(rows, m_blk)                       # tail block handled by Pallas

    # VMEM budget: double-buffered in/out tiles + 2x the (revisited) S block.
    s_bytes = k_in * k_out * 2
    vmem_needed = 2 * m_blk * bytes_per_row + 2 * s_bytes + (2 << 20)
    vmem_limit = int(min(48 << 20, max(vmem_needed, 32 << 20)))

    x_view = x.reshape(rows, k_in)                    # pure metadata reshape
    kernel = functools.partial(_unpool_kernel, split_f32=split_f32)

    cost = pl.CostEstimate(
        flops=2 * rows * k_in * k_out * (3 if split_f32 else 1),
        transcendentals=0,
        bytes_accessed=(rows * (k_in + k_out)) * itemsize + s_bytes,
    )

    out_view = pl.pallas_call(
        kernel,
        out_shape=jax.ShapeDtypeStruct((rows, k_out), x.dtype),
        grid_spec=pltpu.PrefetchScalarGridSpec(
            num_scalar_prefetch=0,
            grid=(grid,),
            in_specs=[
                pl.BlockSpec((m_blk, k_in), lambda i: (i, 0)),
                pl.BlockSpec((k_in, k_out), lambda i: (0, 0)),   # constant block
            ],
            out_specs=pl.BlockSpec((m_blk, k_out), lambda i: (i, 0)),
        ),
        compiler_params=pltpu.CompilerParams(
            dimension_semantics=("parallel",),
            vmem_limit_bytes=vmem_limit,
        ),
        cost_estimate=cost,
    )(x_view, scat)

    # Pure metadata reshape back to the upsampled NCHW tensor.
    return out_view.reshape(n, c, h * s, w * s)


def _reference_unpool(x, stride=2):
    n, c, h, w = x.shape
    out = jnp.zeros((n, c, h * stride, w * stride), dtype=x.dtype)
    return out.at[:, :, ::stride, ::stride].set(x)


if __name__ == "__main__":
    k0, k1 = jax.random.split(jax.random.PRNGKey(0))

    # Main check: module-default shapes.
    x = jax.random.normal(k0, (2, 4, 16, 16), dtype=jnp.float32)
    out = jax.block_until_ready(unpool(x, stride=2))
    ref = _reference_unpool(x, stride=2)
    assert out.shape == (2, 4, 32, 32), out.shape
    assert jnp.array_equal(out, ref), "mismatch vs reference"

    # Secondary check: non-divisible row count -> cdiv grid with a tail block.
    x2 = jax.random.normal(k1, (2, 3, 16, 16), dtype=jnp.float32)
    out2 = jax.block_until_ready(unpool(x2, stride=2))
    assert jnp.array_equal(out2, _reference_unpool(x2, stride=2)), "tail mismatch"

    print("KERNEL_OK")
</pallas_src>

<mosaic_0001>
module attributes {stable_mosaic.version = 11 : i64} {
  func.func @_unpool_kernel(%arg0: i32, %arg1: memref<8x128xf32, #tpu.memory_space<vmem>>, %arg2: memref<128x512xbf16, #tpu.memory_space<vmem>>, %arg3: memref<8x512xf32, #tpu.memory_space<vmem>>) attributes {dimension_semantics = [#tpu.dimension_semantics<parallel>], iteration_bounds = array<i64: 2>, scalar_prefetch = 0 : i64, scratch_operands = 0 : i64, tpu.core_type = #tpu.core_type<tc>, window_params = [{transform_indices = @transform_0, window_bounds = array<i64: 8, 128>}, {pipeline_mode = #tpu.pipeline_mode<synchronous>, transform_indices = @transform_1, window_bounds = array<i64: 128, 512>}, {transform_indices = @transform_2, window_bounds = array<i64: 8, 512>}]} {
    %c0 = arith.constant 0 : index
    %c0_0 = arith.constant 0 : index
    %0 = vector.load %arg1[%c0, %c0_0] : memref<8x128xf32, #tpu.memory_space<vmem>>, vector<8x128xf32>
    %c0_1 = arith.constant 0 : index
    %c0_2 = arith.constant 0 : index
    %1 = vector.load %arg2[%c0_1, %c0_2] : memref<128x512xbf16, #tpu.memory_space<vmem>>, vector<128x512xbf16>
    %2 = arith.truncf %0 : vector<8x128xf32> to vector<8x128xbf16>
    %3 = arith.extf %2 : vector<8x128xbf16> to vector<8x128xf32>
    %4 = arith.subf %0, %3 : vector<8x128xf32>
    %5 = arith.truncf %4 : vector<8x128xf32> to vector<8x128xbf16>
    %6 = arith.extf %5 : vector<8x128xbf16> to vector<8x128xf32>
    %7 = arith.subf %4, %6 : vector<8x128xf32>
    %8 = arith.truncf %7 : vector<8x128xf32> to vector<8x128xbf16>
    %cst = arith.constant dense<0.000000e+00> : vector<8x512xf32>
    %9 = tpu.matmul %2, %1, %cst {dimension_numbers = #tpu.dot_dimension_numbers<[1], [0], [0], [1], [0, 0, 1, 1], [], []>} : vector<8x128xbf16>, vector<128x512xbf16>, vector<8x512xf32> -> vector<8x512xf32>
    %cst_3 = arith.constant dense<0.000000e+00> : vector<8x512xf32>
    %10 = tpu.matmul %5, %1, %cst_3 {dimension_numbers = #tpu.dot_dimension_numbers<[1], [0], [0], [1], [0, 0, 1, 1], [], []>} : vector<8x128xbf16>, vector<128x512xbf16>, vector<8x512xf32> -> vector<8x512xf32>
    %11 = arith.addf %9, %10 : vector<8x512xf32>
    %cst_4 = arith.constant dense<0.000000e+00> : vector<8x512xf32>
    %12 = tpu.matmul %8, %1, %cst_4 {dimension_numbers = #tpu.dot_dimension_numbers<[1], [0], [0], [1], [0, 0, 1, 1], [], []>} : vector<8x128xbf16>, vector<128x512xbf16>, vector<8x512xf32> -> vector<8x512xf32>
    %13 = arith.addf %11, %12 : vector<8x512xf32>
    %c0_5 = arith.constant 0 : index
    %c0_6 = arith.constant 0 : index
    %14 = vector.load %arg3[%c0_5, %c0_6] : memref<8x512xf32, #tpu.memory_space<vmem>>, vector<8x512xf32>
    tpu.vector_store %arg3[%c0_5, %c0_6], %13 {strides = array<i32>} : memref<8x512xf32, #tpu.memory_space<vmem>>, vector<8x512xf32>,
    return
  }
  func.func @transform_0(%arg0: i32) -> (i32, i32) {
    %c0_i32 = arith.constant 0 : i32
    %c0_i32_0 = arith.constant 0 : i32
    return %arg0, %c0_i32 : i32, i32
  }
  func.func @transform_1(%arg0: i32) -> (i32, i32) {
    %c0_i32 = arith.constant 0 : i32
    %c0_i32_0 = arith.constant 0 : i32
    %c0_i32_1 = arith.constant 0 : i32
    return %c0_i32, %c0_i32_0 : i32, i32
  }
  func.func @transform_2(%arg0: i32) -> (i32, i32) {
    %c0_i32 = arith.constant 0 : i32
    %c0_i32_0 = arith.constant 0 : i32
    return %arg0, %c0_i32 : i32, i32
  }
}

</mosaic_0001>

<llo_original>
// kernel: tpu_custom_call.1
$region0: #{tpu_custom_call.1}
  #allocation0 [shape = 'u32[]', space=smem, size = 0x4, offset = 0x4, fixed_abs, tag = 'smem constant byte address 0x4 - core index']
  #allocation1 [shape = 'u32[144,128]{1,0:T(1,128)}', space=vmem, size = 0x12000, scoped, tag = 'internal scratch']
  %s0 = inlined_call_operand.hbm [shape: f32[16,128], index: 0, kind: input, shape index: {}]
  %s1 = inlined_call_operand.hbm [shape: bf16[128,512], index: 1, kind: input, shape index: {}]
  %s2 = inlined_call_operand.hbm [shape: f32[16,512], index: 2, kind: output, shape index: {}]
  %s3 = sld [smem:[#allocation0]]
  $region49: #{tpu_custom_call.1} parent=0
    _
  %s5 = ssub.s32 1, %s3
  %s6 = scalar_select 0, %s5, %s3
  $region1: #{tpu_custom_call.1} parent=0
    #allocation2 [shape = 'u8[8192]{0}', space=vmem, size = 0x2000, scoped, tag = 'input window, operand 0']
    #allocation3 [shape = 's32[2]{0}', space=sflag, size = 0x8, scoped, tag = 'scoped memory for tpu_custom_call.1']
    #allocation4 [shape = 's32[2]{0}', space=sflag, size = 0x8, scoped, tag = 'scoped memory for tpu_custom_call.1']
    #allocation5 [shape = 'u8[131072]{0}', space=vmem, size = 0x20000, scoped, tag = 'input window, operand 1, single buffered']
    #allocation6 [shape = 's32[1]{0}', space=sflag, size = 0x4, scoped, tag = 'scoped memory for tpu_custom_call.1']
    #allocation7 [shape = 'u8[32768]{0}', space=vmem, size = 0x8000, scoped, tag = 'output window, operand 0']
    %7 = vsyncpa [#allocation3], 0
    %s8 = scalar_lea.sflag [#allocation3], 1
    %9 = vsyncpa %s8, 0
    %10 = vsyncpa [#allocation6], 0
    %11 = vsyncpa [#allocation4], 0
    %s12 = scalar_lea.sflag [#allocation4], 1
    %13 = vsyncpa %s12, 0
    loop: start=0, step=1, limit=4
    $region2: #{tpu_custom_call.1} parent=1 // loop_pre_header
      _
    $region3: #{tpu_custom_call.1} parent=1 // loop_header
      %s15 = sphi 0, %s19
      %p16 = scmp.ge.s32.totalorder %s15, 4
      %s25 = sphi 0, %s27
      %s28 = sphi 0, %s25
      %s29 = sphi 0, %s28
      %s45 = sphi 0, %s29
      %s49 = sphi 0, %s49
      %s51 = sphi 0, %s49
      %s52 = sphi 0, %s51
      %s66 = sphi 0, %s52
      %s72 = sphi 0, %s74
      %s75 = sphi 0, %s72
      %s76 = sphi 0, %s75
      %s92 = sphi 0, %s76
    $region4: #{tpu_custom_call.1} parent=1 // loop_header_branch
      %18 = sbr.rel (%p16) target = $region8
    $region5: #{tpu_custom_call.1} parent=1 // loop_body
      %s20 = ssub.s32 %s15, 1
      %s21 = ssub.s32 %s15, 2
      %s22 = sadd.s32 %s15, 1
      %s23 = ssub.s32 %s15, %s22
      %p24 = scmp.eq.s32.totalorder %s23, 0
      %s26 = sadd.s32 %s25, 1
      %s27 = scalar_select %p24, %s25, %s26
      %p30 = pneg %p24
      %p31 = scmp.eq.s32.totalorder %s15, 1
      %p32 = por %p30, %p31
      %p33 = scmp.ne.s32.totalorder %s25, %s28
      %p34 = scmp.eq.s32.totalorder %s15, 0
      %p35 = por %p33, %p34
      %p36 = scmp.ne.s32.totalorder %s25, %s28
      %p37 = scmp.eq.s32.totalorder %s20, 1
      %p38 = por %p36, %p37
      %p39 = scmp.ne.s32.totalorder %s28, %s29
      %p40 = scmp.eq.s32.totalorder %s20, 0
      %p41 = por %p39, %p40
      %p42 = scmp.ne.s32.totalorder %s28, %s29
      %p43 = scmp.eq.s32.totalorder %s21, 1
      %p44 = por %p42, %p43
      %p46 = scmp.ne.s32.totalorder %s29, %s45
      %p47 = scmp.eq.s32.totalorder %s21, 0
      %p48 = por %p46, %p47
      %s50 = sadd.s32 %s49, 1
      %p53 = scmp.eq.s32.totalorder %s15, 1
      %p54 = scmp.ne.s32.totalorder %s49, %s51
      %p55 = scmp.eq.s32.totalorder %s15, 0
      %p56 = por %p54, %p55
      %p57 = scmp.ne.s32.totalorder %s49, %s51
      %p58 = scmp.eq.s32.totalorder %s20, 1
      %p59 = por %p57, %p58
      %p60 = scmp.ne.s32.totalorder %s51, %s52
      %p61 = scmp.eq.s32.totalorder %s20, 0
      %p62 = por %p60, %p61
      %p63 = scmp.ne.s32.totalorder %s51, %s52
      %p64 = scmp.eq.s32.totalorder %s21, 1
      %p65 = por %p63, %p64
      %p67 = scmp.ne.s32.totalorder %s52, %s66
      %p68 = scmp.eq.s32.totalorder %s21, 0
      %p69 = por %p67, %p68
      %s70 = ssub.s32 %s15, %s22
      %p71 = scmp.eq.s32.totalorder %s70, 0
      %s73 = sadd.s32 %s72, 1
      %s74 = scalar_select %p71, %s72, %s73
      %p77 = pneg %p71
      %p78 = scmp.eq.s32.totalorder %s15, 1
      %p79 = por %p77, %p78
      %p80 = scmp.ne.s32.totalorder %s72, %s75
      %p81 = scmp.eq.s32.totalorder %s15, 0
      %p82 = por %p80, %p81
      %p83 = scmp.ne.s32.totalorder %s72, %s75
      %p84 = scmp.eq.s32.totalorder %s20, 1
      %p85 = por %p83, %p84
      %p86 = scmp.ne.s32.totalorder %s75, %s76
      %p87 = scmp.eq.s32.totalorder %s20, 0
      %p88 = por %p86, %p87
      %p89 = scmp.ne.s32.totalorder %s75, %s76
      %p90 = scmp.eq.s32.totalorder %s21, 1
      %p91 = por %p89, %p90
      %p93 = scmp.ne.s32.totalorder %s76, %s92
      %p94 = scmp.eq.s32.totalorder %s21, 0
      %p95 = por %p93, %p94
      %p96 = scmp.le.s32.totalorder 1, %s15
      %p97 = scmp.lt.s32.totalorder %s15, 3
      %p98 = pnand %p96, %p97
      %p99 = pneg %p98
      // Predicated region
      $region9: #{tpu_custom_call.1} parent=5 // pred_check
        _
      $region10: #{tpu_custom_call.1} parent=5 // pred_check_branch
        %101 = sbr.rel (%p98) target = $region12
      $region11: #{tpu_custom_call.1} parent=5 // pred_region
        %s102 = ssub.s32 %s15, 1
        // Predicated region
        $region13: #{tpu_custom_call.1} parent=11 // pred_check
          %p103 = pneg %p62
        $region14: #{tpu_custom_call.1} parent=11 // pred_check_branch
          %105 = sbr.rel (%p103) target = $region16
        $region15: #{tpu_custom_call.1} parent=11 // pred_region
          %s107 = ssub.s32 4096, 4096
          %108 = vsyncadd [#allocation6], %s107
          %s109 = sshll.u32 [#allocation5], 4
          %s110 = int_to_ptr.vmem [resolvable:$true] %s109
          %115 = dma.hbm_to_vmem [thread:$0]  %s1, 4096, %s110, [#allocation6], 256, 256, 16
        $region16: #{tpu_custom_call.1} parent=11 // pred_fallthru
          _
      $region12: #{tpu_custom_call.1} parent=5 // pred_fallthru
        _
      %p116 = scmp.lt.s32.totalorder %s15, 2
      // Predicated region
      $region17: #{tpu_custom_call.1} parent=5 // pred_check
        %p117 = pneg %p116
      $region18: #{tpu_custom_call.1} parent=5 // pred_check_branch
        %119 = sbr.rel (%p117) target = $region20
      $region19: #{tpu_custom_call.1} parent=5 // pred_region
        // Predicated region
        $region21: #{tpu_custom_call.1} parent=19 // pred_check
          %p120 = pneg %p35
        $region22: #{tpu_custom_call.1} parent=19 // pred_check_branch
          %122 = sbr.rel (%p120) target = $region24
        $region23: #{tpu_custom_call.1} parent=19 // pred_region
          %s123 = sand.u32 %s25, 1
          %s124 = scalar_lea.sflag [#allocation3], %s123
          %s125 = sand.u32 %s25, 1
          %s126 = smul.addr %s125, 8
          %s127 = scalar_lea.vmem [#allocation2], %s126
          %s129 = ssub.s32 128, 128
          %130 = vsyncadd %s124, %s129
          %s131 = smul.addr %s15, 128
          %s132 = scalar_lea.hbm %s0, %s131
          %s134 = sshll.u32 %s127, 4
          %s135 = int_to_ptr.vmem [resolvable:$true] %s134
          %137 = dma.hbm_to_vmem [thread:$0]  %s132, 128, %s135, %s124
        $region24: #{tpu_custom_call.1} parent=19 // pred_fallthru
          _
      $region20: #{tpu_custom_call.1} parent=5 // pred_fallthru
        _
      %p138 = scmp.le.s32.totalorder 1, %s15
      %p139 = scmp.lt.s32.totalorder %s15, 3
      %p140 = pnand %p138, %p139
      %p141 = pneg %p140
      // Predicated region
      $region25: #{tpu_custom_call.1} parent=5 // pred_check
        _
      $region26: #{tpu_custom_call.1} parent=5 // pred_check_branch
        %143 = sbr.rel (%p140) target = $region28
      $region27: #{tpu_custom_call.1} parent=5 // pred_region
        %s144 = ssub.s32 %s15, 1
        %s145 = sand.u32 %s28, 1
        %s146 = scalar_lea.sflag [#allocation3], %s145
        %s147 = sand.u32 %s28, 1
        %s148 = smul.addr %s147, 8
        %s149 = scalar_lea.vmem [#allocation2], %s148
        // Predicated region
        $region29: #{tpu_custom_call.1} parent=27 // pred_check
          %p150 = pneg %p41
        $region30: #{tpu_custom_call.1} parent=27 // pred_check_branch
          %152 = sbr.rel (%p150) target = $region32
        $region31: #{tpu_custom_call.1} parent=27 // pred_region
          %153 = dma.done %s146, 128
        $region32: #{tpu_custom_call.1} parent=27 // pred_fallthru
          _
        // Predicated region
        $region33: #{tpu_custom_call.1} parent=27 // pred_check
          %p154 = pneg %p62
        $region34: #{tpu_custom_call.1} parent=27 // pred_check_branch
          %156 = sbr.rel (%p154) target = $region36
        $region35: #{tpu_custom_call.1} parent=27 // pred_region
          %157 = dma.done [#allocation6], 4096
        $region36: #{tpu_custom_call.1} parent=27 // pred_fallthru
          _
        %s158 = sand.u32 %s28, 1
        %s159 = scalar_lea.sflag [#allocation3], %s158
        %s160 = sand.u32 %s28, 1
        %s161 = smul.addr %s160, 8
        %s162 = scalar_lea.vmem [#allocation2], %s161
        %p163 = pneg %p41
        %p164 = pneg %p38
        %p165 = pneg %p62
        %p166 = pneg %p59
        %p167 = pneg %p88
        %p168 = pneg %p85
        %s169 = sand.u32 %s75, 1
        %s170 = scalar_lea.sflag [#allocation4], %s169
        %s171 = sand.u32 %s75, 1
        %s172 = smul.addr %s171, 32
        %s173 = scalar_lea.vmem [#allocation7], %s172
        %v175 = vld [vmem:[%s149] sm:$0xff]
        %v176 = vld [vmem:[#allocation5] sm:$0xff]
        %v177 = vld [vmem:[#allocation5 + $0x8] sm:$0xff]
        %v178 = vld [vmem:[#allocation5 + $0x10] sm:$0xff]
        %v179 = vld [vmem:[#allocation5 + $0x18] sm:$0xff]
        %v180 = vld [vmem:[#allocation5 + $0x20] sm:$0xff]
        %v181 = vld [vmem:[#allocation5 + $0x28] sm:$0xff]
        %v182 = vld [vmem:[#allocation5 + $0x30] sm:$0xff]
        %v183 = vld [vmem:[#allocation5 + $0x38] sm:$0xff]
        %v184 = vld [vmem:[#allocation5 + $0x40] sm:$0xff]
        %v185 = vld [vmem:[#allocation5 + $0x48] sm:$0xff]
        %v186 = vld [vmem:[#allocation5 + $0x50] sm:$0xff]
        %v187 = vld [vmem:[#allocation5 + $0x58] sm:$0xff]
        %v188 = vld [vmem:[#allocation5 + $0x60] sm:$0xff]
        %v189 = vld [vmem:[#allocation5 + $0x68] sm:$0xff]
        %v190 = vld [vmem:[#allocation5 + $0x70] sm:$0xff]
        %v191 = vld [vmem:[#allocation5 + $0x78] sm:$0xff]
        %v192 = vld [vmem:[#allocation5 + $0x80] sm:$0xff]
        %v193 = vld [vmem:[#allocation5 + $0x88] sm:$0xff]
        %v194 = vld [vmem:[#allocation5 + $0x90] sm:$0xff]
        %v195 = vld [vmem:[#allocation5 + $0x98] sm:$0xff]
        %v196 = vld [vmem:[#allocation5 + $0xa0] sm:$0xff]
        %v197 = vld [vmem:[#allocation5 + $0xa8] sm:$0xff]
        %v198 = vld [vmem:[#allocation5 + $0xb0] sm:$0xff]
        %v199 = vld [vmem:[#allocation5 + $0xb8] sm:$0xff]
        %v200 = vld [vmem:[#allocation5 + $0xc0] sm:$0xff]
        %v201 = vld [vmem:[#allocation5 + $0xc8] sm:$0xff]
        %v202 = vld [vmem:[#allocation5 + $0xd0] sm:$0xff]
        %v203 = vld [vmem:[#allocation5 + $0xd8] sm:$0xff]
        %v204 = vld [vmem:[#allocation5 + $0xe0] sm:$0xff]
        %v205 = vld [vmem:[#allocation5 + $0xe8] sm:$0xff]
        %v206 = vld [vmem:[#allocation5 + $0xf0] sm:$0xff]
        %v207 = vld [vmem:[#allocation5 + $0xf8] sm:$0xff]
        %v208 = vpack.c.bf16 %v175, %v175
        %v209 = vunpack.c.l.bf16 %v208
        %v210 = vsub.f32 %v175, %v209
        %v211 = vpack.c.bf16 %v210, %v210
        %v212 = vunpack.c.l.bf16 %v211
        %v213 = vsub.f32 %v210, %v212
        %v214 = vpack.c.bf16 %v213, %v213
        %v247 = vunpack.c.l.b16 %v176
        %v248 = vunpack.c.h.b16 %v176
        %v249 = vunpack.c.l.b16 %v177
        %v250 = vunpack.c.h.b16 %v177
        %v251 = vunpack.c.l.b16 %v178
        %v252 = vunpack.c.h.b16 %v178
        %v253 = vunpack.c.l.b16 %v179
        %v254 = vunpack.c.h.b16 %v179
        %v255 = vunpack.c.l.b16 %v180
        %v256 = vunpack.c.h.b16 %v180
        %v257 = vunpack.c.l.b16 %v181
        %v258 = vunpack.c.h.b16 %v181
        %v259 = vunpack.c.l.b16 %v182
        %v260 = vunpack.c.h.b16 %v182
        %v261 = vunpack.c.l.b16 %v183
        %v262 = vunpack.c.h.b16 %v183
        %v263 = vunpack.c.l.b16 %v184
        %v264 = vunpack.c.h.b16 %v184
        %v265 = vunpack.c.l.b16 %v185
        %v266 = vunpack.c.h.b16 %v185
        %v267 = vunpack.c.l.b16 %v186
        %v268 = vunpack.c.h.b16 %v186
        %v269 = vunpack.c.l.b16 %v187
        %v270 = vunpack.c.h.b16 %v187
        %v271 = vunpack.c.l.b16 %v188
        %v272 = vunpack.c.h.b16 %v188
        %v273 = vunpack.c.l.b16 %v189
        %v274 = vunpack.c.h.b16 %v189
        %v275 = vunpack.c.l.b16 %v190
        %v276 = vunpack.c.h.b16 %v190
        %v277 = vunpack.c.l.b16 %v191
        %v278 = vunpack.c.h.b16 %v191
        %v279 = vunpack.c.l.b16 %v192
        %v280 = vunpack.c.h.b16 %v192
        %v281 = vunpack.c.l.b16 %v193
        %v282 = vunpack.c.h.b16 %v193
        %v283 = vunpack.c.l.b16 %v194
        %v284 = vunpack.c.h.b16 %v194
        %v285 = vunpack.c.l.b16 %v195
        %v286 = vunpack.c.h.b16 %v195
        %v287 = vunpack.c.l.b16 %v196
        %v288 = vunpack.c.h.b16 %v196
        %v289 = vunpack.c.l.b16 %v197
        %v290 = vunpack.c.h.b16 %v197
        %v291 = vunpack.c.l.b16 %v198
        %v292 = vunpack.c.h.b16 %v198
        %v293 = vunpack.c.l.b16 %v199
        %v294 = vunpack.c.h.b16 %v199
        %v295 = vunpack.c.l.b16 %v200
        %v296 = vunpack.c.h.b16 %v200
        %v297 = vunpack.c.l.b16 %v201
        %v298 = vunpack.c.h.b16 %v201
        %v299 = vunpack.c.l.b16 %v202
        %v300 = vunpack.c.h.b16 %v202
        %v301 = vunpack.c.l.b16 %v203
        %v302 = vunpack.c.h.b16 %v203
        %v303 = vunpack.c.l.b16 %v204
        %v304 = vunpack.c.h.b16 %v204
        %v305 = vunpack.c.l.b16 %v205
        %v306 = vunpack.c.h.b16 %v205
        %v307 = vunpack.c.l.b16 %v206
        %v308 = vunpack.c.h.b16 %v206
        %v309 = vunpack.c.l.b16 %v207
        %v310 = vunpack.c.h.b16 %v207
        %v311 = vpack.c.b16 %v251, %v247
        %v312 = vpack.c.b16 %v252, %v248
        %v313 = vpack.c.b16 %v253, %v249
        %v314 = vpack.c.b16 %v254, %v250
        %v315 = vpack.c.b16 %v259, %v255
        %v316 = vpack.c.b16 %v260, %v256
        %v317 = vpack.c.b16 %v261, %v257
        %v318 = vpack.c.b16 %v262, %v258
        %v319 = vpack.c.b16 %v267, %v263
        %v320 = vpack.c.b16 %v268, %v264
        %v321 = vpack.c.b16 %v269, %v265
        %v322 = vpack.c.b16 %v270, %v266
        %v323 = vpack.c.b16 %v275, %v271
        %v324 = vpack.c.b16 %v276, %v272
        %v325 = vpack.c.b16 %v277, %v273
        %v326 = vpack.c.b16 %v278, %v274
        %v327 = vpack.c.b16 %v283, %v279
        %v328 = vpack.c.b16 %v284, %v280
        %v329 = vpack.c.b16 %v285, %v281
        %v330 = vpack.c.b16 %v286, %v282
        %v331 = vpack.c.b16 %v291, %v287
        %v332 = vpack.c.b16 %v292, %v288
        %v333 = vpack.c.b16 %v293, %v289
        %v334 = vpack.c.b16 %v294, %v290
        %v335 = vpack.c.b16 %v299, %v295
        %v336 = vpack.c.b16 %v300, %v296
        %v337 = vpack.c.b16 %v301, %v297
        %v338 = vpack.c.b16 %v302, %v298
        %v339 = vpack.c.b16 %v307, %v303
        %v340 = vpack.c.b16 %v308, %v304
        %v341 = vpack.c.b16 %v309, %v305
        %v342 = vpack.c.b16 %v310, %v306
        %375 = vmatprep.subr.bf16.mxu0 %v312
        %376 = vmatpush1.bf16.msra.mxu0 %v311
        %377 = vmatprep.subr.bf16.mxu0 %v316
        %378 = vmatpush1.bf16.msra.mxu0 %v315
        %379 = vmatprep.subr.bf16.mxu0 %v320
        %380 = vmatpush1.bf16.msra.mxu0 %v319
        %381 = vmatprep.subr.bf16.mxu0 %v324
        %382 = vmatpush1.bf16.msra.mxu0 %v323
        %383 = vmatprep.subr.bf16.mxu0 %v328
        %384 = vmatpush1.bf16.msra.mxu0 %v327
        %385 = vmatprep.subr.bf16.mxu0 %v332
        %386 = vmatpush1.bf16.msra.mxu0 %v331
        %387 = vmatprep.subr.bf16.mxu0 %v336
        %388 = vmatpush1.bf16.msra.mxu0 %v335
        %389 = vmatprep.subr.bf16.mxu0 %v340
        %390 = vmatpush1.bf16.msra.mxu0 %v339
        %391 = vmatprep.subr.bf16.mxu0 0
        %392 = vmatpush1.bf16.msra.mxu0 0
        %393 = vmatprep.subr.bf16.mxu0 0
        %394 = vmatpush1.bf16.msra.mxu0 0
        %395 = vmatprep.subr.bf16.mxu0 0
        %396 = vmatpush1.bf16.msra.mxu0 0
        %397 = vmatprep.subr.bf16.mxu0 0
        %398 = vmatpush1.bf16.msra.mxu0 0
        %399 = vmatprep.subr.bf16.mxu0 0
        %400 = vmatpush1.bf16.msra.mxu0 0
        %401 = vmatprep.subr.bf16.mxu0 0
        %402 = vmatpush1.bf16.msra.mxu0 0
        %403 = vmatprep.subr.bf16.mxu0 0
        %404 = vmatpush1.bf16.msra.mxu0 0
        %405 = vmatprep.subr.bf16.mxu0 0
        %406 = vmatpush1.bf16.msra.mxu0 0
        %407 = vmatprep.mubr.bf16.mxu0 0
        %408 = vmatmul.mubr.bf16.gmra.mrb[0].mxu0 %v211
        %v409 = vpop.f32.mrb[0].mxu0
        %v410 = vadd.f32 0.0, %v409
        %v411 = vpop.f32.mrb[0].mxu0
        %v412 = vadd.f32 0.0, %v411
        %v413 = vpop.f32.mrb[0].mxu0
        %v414 = vpop.f32.mrb[0].mxu0
        %415 = vdwg.mxu0
        %416 = vmatprep.subr.bf16.mxu0 %v314
        %417 = vmatpush1.bf16.msra.mxu0 %v313
        %418 = vmatprep.subr.bf16.mxu0 %v318
        %419 = vmatpush1.bf16.msra.mxu0 %v317
        %420 = vmatprep.subr.bf16.mxu0 %v322
        %421 = vmatpush1.bf16.msra.mxu0 %v321
        %422 = vmatprep.subr.bf16.mxu0 %v326
        %423 = vmatpush1.bf16.msra.mxu0 %v325
        %424 = vmatprep.subr.bf16.mxu0 %v330
        %425 = vmatpush1.bf16.msra.mxu0 %v329
        %426 = vmatprep.subr.bf16.mxu0 %v334
        %427 = vmatpush1.bf16.msra.mxu0 %v333
        %428 = vmatprep.subr.bf16.mxu0 %v338
        %429 = vmatpush1.bf16.msra.mxu0 %v337
        %430 = vmatprep.subr.bf16.mxu0 %v342
        %431 = vmatpush1.bf16.msra.mxu0 %v341
        %432 = vmatprep.subr.bf16.mxu0 0
        %433 = vmatpush1.bf16.msra.mxu0 0
        %434 = vmatprep.subr.bf16.mxu0 0
        %435 = vmatpush1.bf16.msra.mxu0 0
        %436 = vmatprep.subr.bf16.mxu0 0
        %437 = vmatpush1.bf16.msra.mxu0 0
        %438 = vmatprep.subr.bf16.mxu0 0
        %439 = vmatpush1.bf16.msra.mxu0 0
        %440 = vmatprep.subr.bf16.mxu0 0
        %441 = vmatpush1.bf16.msra.mxu0 0
        %442 = vmatprep.subr.bf16.mxu0 0
        %443 = vmatpush1.bf16.msra.mxu0 0
        %444 = vmatprep.subr.bf16.mxu0 0
        %445 = vmatpush1.bf16.msra.mxu0 0
        %446 = vmatprep.subr.bf16.mxu0 0
        %447 = vmatpush1.bf16.msra.mxu0 0
        %448 = vmatprep.mubr.bf16.mxu0 0
        %449 = vmatmul.mubr.bf16.gmra.mrb[0].mxu0 %v211
        %v450 = vpop.f32.mrb[0].mxu0
        %v451 = vadd.f32 0.0, %v450
        %v452 = vpop.f32.mrb[0].mxu0
        %v453 = vadd.f32 0.0, %v452
        %v454 = vpop.f32.mrb[0].mxu0
        %v455 = vpop.f32.mrb[0].mxu0
        %456 = vdwg.mxu0
        %457 = vmatprep.subr.bf16.mxu0 %v312
        %458 = vmatpush1.bf16.msra.mxu0 %v311
        %459 = vmatprep.subr.bf16.mxu0 %v316
        %460 = vmatpush1.bf16.msra.mxu0 %v315
        %461 = vmatprep.subr.bf16.mxu0 %v320
        %462 = vmatpush1.bf16.msra.mxu0 %v319
        %463 = vmatprep.subr.bf16.mxu0 %v324
        %464 = vmatpush1.bf16.msra.mxu0 %v323
        %465 = vmatprep.subr.bf16.mxu0 %v328
        %466 = vmatpush1.bf16.msra.mxu0 %v327
        %467 = vmatprep.subr.bf16.mxu0 %v332
        %468 = vmatpush1.bf16.msra.mxu0 %v331
        %469 = vmatprep.subr.bf16.mxu0 %v336
        %470 = vmatpush1.bf16.msra.mxu0 %v335
        %471 = vmatprep.subr.bf16.mxu0 %v340
        %472 = vmatpush1.bf16.msra.mxu0 %v339
        %473 = vmatprep.subr.bf16.mxu0 0
        %474 = vmatpush1.bf16.msra.mxu0 0
        %475 = vmatprep.subr.bf16.mxu0 0
        %476 = vmatpush1.bf16.msra.mxu0 0
        %477 = vmatprep.subr.bf16.mxu0 0
        %478 = vmatpush1.bf16.msra.mxu0 0
        %479 = vmatprep.subr.bf16.mxu0 0
        %480 = vmatpush1.bf16.msra.mxu0 0
        %481 = vmatprep.subr.bf16.mxu0 0
        %482 = vmatpush1.bf16.msra.mxu0 0
        %483 = vmatprep.subr.bf16.mxu0 0
        %484 = vmatpush1.bf16.msra.mxu0 0
        %485 = vmatprep.subr.bf16.mxu0 0
        %486 = vmatpush1.bf16.msra.mxu0 0
        %487 = vmatprep.subr.bf16.mxu0 0
        %488 = vmatpush1.bf16.msra.mxu0 0
        %489 = vmatprep.mubr.bf16.mxu0 0
        %490 = vmatmul.mubr.bf16.gmra.mrb[0].mxu0 %v208
        %v491 = vpop.f32.mrb[0].mxu0
        %v492 = vadd.f32 %v410, %v491
        %v493 = vpop.f32.mrb[0].mxu0
        %v494 = vadd.f32 %v412, %v493
        %v495 = vpop.f32.mrb[0].mxu0
        %v496 = vpop.f32.mrb[0].mxu0
        %497 = vdwg.mxu0
        %498 = vmatprep.subr.bf16.mxu0 %v314
        %499 = vmatpush1.bf16.msra.mxu0 %v313
        %500 = vmatprep.subr.bf16.mxu0 %v318
        %501 = vmatpush1.bf16.msra.mxu0 %v317
        %502 = vmatprep.subr.bf16.mxu0 %v322
        %503 = vmatpush1.bf16.msra.mxu0 %v321
        %504 = vmatprep.subr.bf16.mxu0 %v326
        %505 = vmatpush1.bf16.msra.mxu0 %v325
        %506 = vmatprep.subr.bf16.mxu0 %v330
        %507 = vmatpush1.bf16.msra.mxu0 %v329
        %508 = vmatprep.subr.bf16.mxu0 %v334
        %509 = vmatpush1.bf16.msra.mxu0 %v333
        %510 = vmatprep.subr.bf16.mxu0 %v338
        %511 = vmatpush1.bf16.msra.mxu0 %v337
        %512 = vmatprep.subr.bf16.mxu0 %v342
        %513 = vmatpush1.bf16.msra.mxu0 %v341
        %514 = vmatprep.subr.bf16.mxu0 0
        %515 = vmatpush1.bf16.msra.mxu0 0
        %516 = vmatprep.subr.bf16.mxu0 0
        %517 = vmatpush1.bf16.msra.mxu0 0
        %518 = vmatprep.subr.bf16.mxu0 0
        %519 = vmatpush1.bf16.msra.mxu0 0
        %520 = vmatprep.subr.bf16.mxu0 0
        %521 = vmatpush1.bf16.msra.mxu0 0
        %522 = vmatprep.subr.bf16.mxu0 0
        %523 = vmatpush1.bf16.msra.mxu0 0
        %524 = vmatprep.subr.bf16.mxu0 0
        %525 = vmatpush1.bf16.msra.mxu0 0
        %526 = vmatprep.subr.bf16.mxu0 0
        %527 = vmatpush1.bf16.msra.mxu0 0
        %528 = vmatprep.subr.bf16.mxu0 0
        %529 = vmatpush1.bf16.msra.mxu0 0
        %530 = vmatprep.mubr.bf16.mxu0 0
        %531 = vmatmul.mubr.bf16.gmra.mrb[0].mxu0 %v208
        %v532 = vpop.f32.mrb[0].mxu0
        %v533 = vadd.f32 %v451, %v532
        %v534 = vpop.f32.mrb[0].mxu0
        %v535 = vadd.f32 %v453, %v534
        %v536 = vpop.f32.mrb[0].mxu0
        %v537 = vpop.f32.mrb[0].mxu0
        %538 = vdwg.mxu0
        %539 = vmatprep.subr.bf16.mxu0 %v312
        %540 = vmatpush1.bf16.msra.mxu0 %v311
        %541 = vmatprep.subr.bf16.mxu0 %v316
        %542 = vmatpush1.bf16.msra.mxu0 %v315
        %543 = vmatprep.subr.bf16.mxu0 %v320
        %544 = vmatpush1.bf16.msra.mxu0 %v319
        %545 = vmatprep.subr.bf16.mxu0 %v324
        %546 = vmatpush1.bf16.msra.mxu0 %v323
        %547 = vmatprep.subr.bf16.mxu0 %v328
        %548 = vmatpush1.bf16.msra.mxu0 %v327
        %549 = vmatprep.subr.bf16.mxu0 %v332
        %550 = vmatpush1.bf16.msra.mxu0 %v331
        %551 = vmatprep.subr.bf16.mxu0 %v336
        %552 = vmatpush1.bf16.msra.mxu0 %v335
        %553 = vmatprep.subr.bf16.mxu0 %v340
        %554 = vmatpush1.bf16.msra.mxu0 %v339
        %555 = vmatprep.subr.bf16.mxu0 0
        %556 = vmatpush1.bf16.msra.mxu0 0
        %557 = vmatprep.subr.bf16.mxu0 0
        %558 = vmatpush1.bf16.msra.mxu0 0
        %559 = vmatprep.subr.bf16.mxu0 0
        %560 = vmatpush1.bf16.msra.mxu0 0
        %561 = vmatprep.subr.bf16.mxu0 0
        %562 = vmatpush1.bf16.msra.mxu0 0
        %563 = vmatprep.subr.bf16.mxu0 0
        %564 = vmatpush1.bf16.msra.mxu0 0
        %565 = vmatprep.subr.bf16.mxu0 0
        %566 = vmatpush1.bf16.msra.mxu0 0
        %567 = vmatprep.subr.bf16.mxu0 0
        %568 = vmatpush1.bf16.msra.mxu0 0
        %569 = vmatprep.subr.bf16.mxu0 0
        %570 = vmatpush1.bf16.msra.mxu0 0
        %571 = vmatprep.mubr.bf16.mxu0 0
        %572 = vmatmul.mubr.bf16.gmra.mrb[0].mxu0 %v214
        %v573 = vpop.f32.mrb[0].mxu0
        %v574 = vadd.f32 0.0, %v573
        %v575 = vpop.f32.mrb[0].mxu0
        %v576 = vadd.f32 0.0, %v575
        %v577 = vpop.f32.mrb[0].mxu0
        %v578 = vpop.f32.mrb[0].mxu0
        %579 = vdwg.mxu0
        %580 = vmatprep.subr.bf16.mxu0 %v314
        %581 = vmatpush1.bf16.msra.mxu0 %v313
        %582 = vmatprep.subr.bf16.mxu0 %v318
        %583 = vmatpush1.bf16.msra.mxu0 %v317
        %584 = vmatprep.subr.bf16.mxu0 %v322
        %585 = vmatpush1.bf16.msra.mxu0 %v321
        %586 = vmatprep.subr.bf16.mxu0 %v326
        %587 = vmatpush1.bf16.msra.mxu0 %v325
        %588 = vmatprep.subr.bf16.mxu0 %v330
        %589 = vmatpush1.bf16.msra.mxu0 %v329
        %590 = vmatprep.subr.bf16.mxu0 %v334
        %591 = vmatpush1.bf16.msra.mxu0 %v333
        %592 = vmatprep.subr.bf16.mxu0 %v338
        %593 = vmatpush1.bf16.msra.mxu0 %v337
        %594 = vmatprep.subr.bf16.mxu0 %v342
        %595 = vmatpush1.bf16.msra.mxu0 %v341
        %596 = vmatprep.subr.bf16.mxu0 0
        %597 = vmatpush1.bf16.msra.mxu0 0
        %598 = vmatprep.subr.bf16.mxu0 0
        %599 = vmatpush1.bf16.msra.mxu0 0
        %600 = vmatprep.subr.bf16.mxu0 0
        %601 = vmatpush1.bf16.msra.mxu0 0
        %602 = vmatprep.subr.bf16.mxu0 0
        %603 = vmatpush1.bf16.msra.mxu0 0
        %604 = vmatprep.subr.bf16.mxu0 0
        %605 = vmatpush1.bf16.msra.mxu0 0
        %606 = vmatprep.subr.bf16.mxu0 0
        %607 = vmatpush1.bf16.msra.mxu0 0
        %608 = vmatprep.subr.bf16.mxu0 0
        %609 = vmatpush1.bf16.msra.mxu0 0
        %610 = vmatprep.subr.bf16.mxu0 0
        %611 = vmatpush1.bf16.msra.mxu0 0
        %612 = vmatprep.mubr.bf16.mxu0 0
        %613 = vmatmul.mubr.bf16.gmra.mrb[0].mxu0 %v214
        %v614 = vpop.f32.mrb[0].mxu0
        %v615 = vadd.f32 0.0, %v614
        %v616 = vpop.f32.mrb[0].mxu0
        %v617 = vadd.f32 0.0, %v616
        %v618 = vpop.f32.mrb[0].mxu0
        %v619 = vpop.f32.mrb[0].mxu0
        %620 = vdwg.mxu0
        %v621 = vadd.f32 %v492, %v574
        %v622 = vadd.f32 %v494, %v576
        %v623 = vadd.f32 %v533, %v615
        %v624 = vadd.f32 %v535, %v617
        %625 = vst [vmem:[%s173] sm:$0xff] %v621
        %626 = vst [vmem:[%s173 + $0x8] sm:$0xff] %v622
        %627 = vst [vmem:[%s173 + $0x10] sm:$0xff] %v623
        %628 = vst [vmem:[%s173 + $0x18] sm:$0xff] %v624
        %s629 = sand.u32 %s75, 1
        %s630 = scalar_lea.sflag [#allocation4], %s629
        %s631 = sand.u32 %s75, 1
        %s632 = smul.addr %s631, 32
        %s633 = scalar_lea.vmem [#allocation7], %s632
        // Predicated region
        $region37: #{tpu_custom_call.1} parent=27 // pred_check
          %p634 = pneg %p85
        $region38: #{tpu_custom_call.1} parent=27 // pred_check_branch
          %636 = sbr.rel (%p634) target = $region40
        $region39: #{tpu_custom_call.1} parent=27 // pred_region
          %s638 = ssub.s32 512, 512
          %639 = vsyncadd %s630, %s638
          %s640 = smul.addr %s20, 4
          %s641 = smul.addr %s640, 128
          %s642 = scalar_lea.hbm %s2, %s641
          %s644 = sshll.u32 %s633, 4
          %s645 = int_to_ptr.vmem [resolvable:$true] %s644
          %647 = dma.vmem_to_hbm [thread:$0]  %s645, 512, %s642, %s630
        $region40: #{tpu_custom_call.1} parent=27 // pred_fallthru
          _
      $region28: #{tpu_custom_call.1} parent=5 // pred_fallthru
        _
      %p648 = scmp.le.s32.totalorder 2, %s15
      // Predicated region
      $region41: #{tpu_custom_call.1} parent=5 // pred_check
        %p649 = pneg %p648
      $region42: #{tpu_custom_call.1} parent=5 // pred_check_branch
        %651 = sbr.rel (%p649) target = $region44
      $region43: #{tpu_custom_call.1} parent=5 // pred_region
        %s652 = ssub.s32 %s15, 2
        // Predicated region
        $region45: #{tpu_custom_call.1} parent=43 // pred_check
          %p653 = pneg %p91
        $region46: #{tpu_custom_call.1} parent=43 // pred_check_branch
          %655 = sbr.rel (%p653) target = $region48
        $region47: #{tpu_custom_call.1} parent=43 // pred_region
          %s656 = sand.u32 %s76, 1
          %s657 = scalar_lea.sflag [#allocation4], %s656
          %s658 = sand.u32 %s76, 1
          %s659 = smul.addr %s658, 32
          %s660 = scalar_lea.vmem [#allocation7], %s659
          %661 = dma.done %s657, 512
        $region48: #{tpu_custom_call.1} parent=43 // pred_fallthru
          _
      $region44: #{tpu_custom_call.1} parent=5 // pred_fallthru
        _
    $region6: #{tpu_custom_call.1} parent=1 // loop_footer
      %s19 = sadd.s32 1, %s15
    $region7: #{tpu_custom_call.1} parent=1 // loop_footer_branch
      %14 = sbr.rel target = $region3
    $region8: #{tpu_custom_call.1} parent=1 // loop_exit
      _
    %662 = vsyncpa [#allocation3], 1
    %s663 = scalar_lea.sflag [#allocation3], 1
    %664 = vsyncpa %s663, 1
    %665 = vsyncpa [#allocation6], 1
    %666 = vsyncpa [#allocation4], 1
    %s667 = scalar_lea.sflag [#allocation4], 1
    %668 = vsyncpa %s667, 1

</llo_original>
